<compile_context>
chip_gen: v7x
topology: tpu7x:2x2x1
jax: 0.10.0
libtpu: 0.0.40
codegen_flags: <defaults>
</compile_context>

<pallas_src>
import math

import jax
import jax.numpy as jnp
from jax.experimental import pallas as pl
from jax.experimental.pallas import tpu as pltpu


_G_CAP = 8  # max lane-grouping factor (block-diag weight bytes grow as G^2)


def _round_up(x, m):
    return -(-x // m) * m


def _linear_kernel(x_ref, w_ref, o_ref):
    # x_ref: (TMg, K)   w_ref: (K, N)   o_ref: (TMg, N)
    o_ref[...] = jnp.dot(
        x_ref[...], w_ref[...], preferred_element_type=jnp.float32
    ).astype(o_ref.dtype)


def _vmem_budget():
    """Returns (output-tile byte budget, physical VMEM bytes) for this TPU."""
    try:
        phys = int(pltpu.get_tpu_info().vmem_capacity_bytes)
    except Exception:
        phys = 64 << 20  # conservative: assume the smallest (v7x-class) VMEM
    if phys <= (64 << 20):
        # v7x-class: ~3.2 TB/s HBM makes the ~0.35us per-step overhead large at
        # small tiles -> push to ~8 MiB output tiles.
        return 8 << 20, phys
    # v5e / v6e (128 MiB physical VMEM): ~5 MiB keeps step overhead < ~10%.
    return 5 << 20, phys


def time_feature_embedding(x, weight, out_dtype=None):
    """Forward of TimeFeatureEmbedding: x @ weight.T (no bias).

    x: (B, L, d_inp); weight: (d_model, d_inp) (PyTorch nn.Linear layout).
    Returns (B, L, d_model).  Pass out_dtype=jnp.bfloat16 to halve output HBM
    traffic if the consumer accepts bf16 (the MXU still accumulates in f32).
    """
    B, L, d_inp = x.shape
    d_model, d_inp_w = weight.shape
    assert d_inp_w == d_inp
    out_dtype = x.dtype if out_dtype is None else jnp.dtype(out_dtype)
    M = B * L

    # ---- Lane-dense output grouping ----------------------------------------
    G = 128 // math.gcd(128, d_model)
    if G > _G_CAP:
        # TODO(synk): lane-densify awkward d_model (tiny gcd with 128) by padding
        # d_model to a multiple of 128 instead of this masked-store fallback.
        G = 1
    K = G * d_inp
    N = G * d_model

    # ---- Tile selection (memory-bound: big tiles, bounded VMEM) -------------
    out_itemsize = jnp.dtype(out_dtype).itemsize
    in_itemsize = jnp.dtype(x.dtype).itemsize
    w_itemsize = jnp.dtype(weight.dtype).itemsize

    row_out = N * out_itemsize                        # one output row in VMEM
    row_in = _round_up(K, 128) * in_itemsize          # x rows are lane-padded to 128
    w_bytes = _round_up(K, 8) * _round_up(N, 128) * w_itemsize

    out_budget, vmem_phys = _vmem_budget()
    total_cap = min(40 << 20, vmem_phys // 2)         # cap on double-buffered working set
    tmg_from_budget = max(8, (out_budget // row_out) // 8 * 8)
    tmg_from_cap = max(
        8, ((total_cap - 2 * w_bytes) // (2 * (row_out + row_in))) // 8 * 8
    )
    TMg_max = min(tmg_from_budget, tmg_from_cap)

    Mg = pl.cdiv(M, G)                                # grouped rows actually needed
    n_tiles = pl.cdiv(Mg, TMg_max)                    # tile count first ...
    if n_tiles == 1 and Mg >= 16:
        n_tiles = 2                                   # give both v7x TensorCores work
    TMg = _round_up(pl.cdiv(Mg, n_tiles), 8)          # ... then balanced tile size

    # Only tiny problems (Mg < TMg) get padded up to one full block; otherwise the
    # kernel runs on exactly cdiv(Mg, TMg) blocks with a masked trailing block.
    Mg_kernel = TMg if Mg < TMg else Mg
    grid_m = pl.cdiv(Mg_kernel, TMg)

    # ---- Operand prep (all no-ops in the common case M % G == 0) ------------
    x2d = x.reshape(M, d_inp)
    rows_needed = Mg_kernel * G
    if rows_needed != M:
        x2d = jnp.pad(x2d, ((0, rows_needed - M), (0, 0)))
    xg = x2d.reshape(Mg_kernel, K)
    wbd = weight.T if G == 1 else jnp.kron(jnp.eye(G, dtype=weight.dtype), weight.T)

    vmem_need = 2 * TMg * (row_out + row_in) + 2 * w_bytes
    vmem_limit = max(
        32 << 20, min(int(vmem_need * 1.25) + (4 << 20), int(vmem_phys * 0.85))
    )

    cost = pl.CostEstimate(
        flops=2 * M * d_inp * d_model,
        transcendentals=0,
        bytes_accessed=(M * d_inp * in_itemsize
                        + d_inp * d_model * w_itemsize
                        + M * d_model * out_itemsize),
    )

    outg = pl.pallas_call(
        _linear_kernel,
        out_shape=jax.ShapeDtypeStruct((Mg_kernel, N), out_dtype),
        grid_spec=pltpu.PrefetchScalarGridSpec(
            num_scalar_prefetch=0,
            grid=(grid_m,),
            in_specs=[
                pl.BlockSpec((TMg, K), lambda i: (i, 0)),
                # Constant index_map -> block index never changes, so Pallas does
                # not re-DMA the resident weight across grid steps.
                pl.BlockSpec((K, N), lambda i: (0, 0)),
            ],
            out_specs=pl.BlockSpec((TMg, N), lambda i: (i, 0)),
        ),
        compiler_params=pltpu.CompilerParams(
            dimension_semantics=("parallel",),  # v7x: shard row tiles across 2 TCs
            vmem_limit_bytes=vmem_limit,
        ),
        cost_estimate=cost,
    )(xg, wbd)

    # Row-major reshape is free; the slice only exists when we actually padded.
    out2d = outg.reshape(rows_needed, d_model)
    if rows_needed != M:
        out2d = out2d[:M]
    # TODO(synk): if a downstream add (e.g. value+positional embedding sum) is
    # available, fuse it here via an extra input ref to save one HBM round trip.
    return out2d.reshape(B, L, d_model)


if __name__ == "__main__":
    # freq='h' -> d_inp = 4 ; small d_model, batch, seq.
    d_inp = 4
    d_model = 32
    B, L = 2, 8

    key = jax.random.PRNGKey(0)
    kx, kw = jax.random.split(key)

    x = jax.random.normal(kx, (B, L, d_inp), dtype=jnp.float32)
    # Deterministic "Linear" weight, PyTorch layout (d_model, d_inp), no bias.
    bound = 1.0 / math.sqrt(d_inp)
    weight = jax.random.uniform(
        kw, (d_model, d_inp), dtype=jnp.float32, minval=-bound, maxval=bound
    )

    out = jax.block_until_ready(time_feature_embedding(x, weight))

    # Reference check (same semantics as nn.Linear(bias=False)).
    ref = jnp.einsum("bld,md->blm", x, weight)
    assert out.shape == (B, L, d_model)
    assert jnp.allclose(out, ref, atol=1e-5, rtol=1e-5)

    print("KERNEL_OK")
</pallas_src>

<mosaic_0001>
module attributes {stable_mosaic.version = 11 : i64} {
  func.func @_linear_kernel(%arg0: i32, %arg1: memref<8x16xf32, #tpu.memory_space<vmem>>, %arg2: memref<16x128xf32, #tpu.memory_space<vmem>>, %arg3: memref<8x128xf32, #tpu.memory_space<vmem>>) attributes {dimension_semantics = [#tpu.dimension_semantics<parallel>], iteration_bounds = array<i64: 1>, scalar_prefetch = 0 : i64, scratch_operands = 0 : i64, tpu.core_type = #tpu.core_type<tc>, window_params = [{transform_indices = @transform_0, window_bounds = array<i64: 8, 16>}, {pipeline_mode = #tpu.pipeline_mode<synchronous>, transform_indices = @transform_1, window_bounds = array<i64: 16, 128>}, {transform_indices = @transform_2, window_bounds = array<i64: 8, 128>}]} {
    %c0 = arith.constant 0 : index
    %c0_0 = arith.constant 0 : index
    %0 = vector.load %arg1[%c0, %c0_0] : memref<8x16xf32, #tpu.memory_space<vmem>>, vector<8x16xf32>
    %c0_1 = arith.constant 0 : index
    %c0_2 = arith.constant 0 : index
    %1 = vector.load %arg2[%c0_1, %c0_2] : memref<16x128xf32, #tpu.memory_space<vmem>>, vector<16x128xf32>
    %cst = arith.constant dense<0.000000e+00> : vector<8x128xf32>
    %2 = tpu.matmul %0, %1, %cst {dimension_numbers = #tpu.dot_dimension_numbers<[1], [0], [0], [1], [0, 0, 1, 1], [], []>} : vector<8x16xf32>, vector<16x128xf32>, vector<8x128xf32> -> vector<8x128xf32>
    %c0_3 = arith.constant 0 : index
    %c0_4 = arith.constant 0 : index
    %3 = vector.load %arg3[%c0_3, %c0_4] : memref<8x128xf32, #tpu.memory_space<vmem>>, vector<8x128xf32>
    tpu.vector_store %arg3[%c0_3, %c0_4], %2 {strides = array<i32>} : memref<8x128xf32, #tpu.memory_space<vmem>>, vector<8x128xf32>,
    return
  }
  func.func @transform_0(%arg0: i32) -> (i32, i32) {
    %c0_i32 = arith.constant 0 : i32
    %c0_i32_0 = arith.constant 0 : i32
    return %arg0, %c0_i32 : i32, i32
  }
  func.func @transform_1(%arg0: i32) -> (i32, i32) {
    %c0_i32 = arith.constant 0 : i32
    %c0_i32_0 = arith.constant 0 : i32
    %c0_i32_1 = arith.constant 0 : i32
    return %c0_i32, %c0_i32_0 : i32, i32
  }
  func.func @transform_2(%arg0: i32) -> (i32, i32) {
    %c0_i32 = arith.constant 0 : i32
    %c0_i32_0 = arith.constant 0 : i32
    return %arg0, %c0_i32 : i32, i32
  }
}

</mosaic_0001>

<llo_original>
// kernel: tpu_custom_call.1
$region0: #{tpu_custom_call.1}
  #allocation0 [shape = 'u32[]', space=smem, size = 0x4, offset = 0x4, fixed_abs, tag = 'smem constant byte address 0x4 - core index']
  #allocation1 [shape = 'u32[144,128]{1,0:T(1,128)}', space=vmem, size = 0x12000, scoped, tag = 'internal scratch']
  %s0 = inlined_call_operand.hbm [shape: f32[8,16], index: 0, kind: input, shape index: {}]
  %s1 = inlined_call_operand.hbm [shape: f32[16,128], index: 1, kind: input, shape index: {}]
  %s2 = inlined_call_operand.hbm [shape: f32[8,128], index: 2, kind: output, shape index: {}]
  %s3 = sld [smem:[#allocation0]]
  $region26: #{tpu_custom_call.1} parent=0
    _
  %s5 = ssub.s32 1, %s3
  %s6 = scalar_select 0, %s5, %s3
  $region1: #{tpu_custom_call.1} parent=0
    #allocation2 [shape = 'u8[4096]{0}', space=vmem, size = 0x1000, scoped, tag = 'input window, operand 0, single buffered']
    #allocation3 [shape = 's32[1]{0}', space=sflag, size = 0x4, scoped, tag = 'scoped memory for tpu_custom_call.1']
    #allocation4 [shape = 's32[1]{0}', space=sflag, size = 0x4, scoped, tag = 'scoped memory for tpu_custom_call.1']
    #allocation5 [shape = 'u8[8192]{0}', space=vmem, size = 0x2000, scoped, tag = 'input window, operand 1, single buffered']
    #allocation6 [shape = 's32[1]{0}', space=sflag, size = 0x4, scoped, tag = 'scoped memory for tpu_custom_call.1']
    #allocation7 [shape = 'u8[4096]{0}', space=vmem, size = 0x1000, scoped, tag = 'output window, operand 0, single buffered']
    %7 = vsyncpa [#allocation3], 0
    %8 = vsyncpa [#allocation6], 0
    %9 = vsyncpa [#allocation4], 0
    // Predicated region
    $region2: #{tpu_custom_call.1} parent=1 // pred_check
      _
    $region3: #{tpu_custom_call.1} parent=1 // pred_check_branch
      %11 = sbr.rel (0) target = $region5
    $region4: #{tpu_custom_call.1} parent=1 // pred_region
      %s13 = ssub.s32 128, 128
      %14 = vsyncadd [#allocation3], %s13
      %s16 = sshll.u32 [#allocation2], 4
      %s17 = int_to_ptr.vmem [resolvable:$true] %s16
      %19 = dma.hbm_to_vmem [thread:$0]  %s0, 128, %s17, [#allocation3]
    $region5: #{tpu_custom_call.1} parent=1 // pred_fallthru
      _
    // Predicated region
    $region6: #{tpu_custom_call.1} parent=1 // pred_check
      _
    $region7: #{tpu_custom_call.1} parent=1 // pred_check_branch
      %21 = sbr.rel (0) target = $region9
    $region8: #{tpu_custom_call.1} parent=1 // pred_region
      %s23 = ssub.s32 256, 256
      %24 = vsyncadd [#allocation6], %s23
      %s25 = sshll.u32 [#allocation5], 4
      %s26 = int_to_ptr.vmem [resolvable:$true] %s25
      %31 = dma.hbm_to_vmem [thread:$0]  %s1, 256, %s26, [#allocation6], 128, 128, 8
    $region9: #{tpu_custom_call.1} parent=1 // pred_fallthru
      _
    // Predicated region
    $region10: #{tpu_custom_call.1} parent=1 // pred_check
      _
    $region11: #{tpu_custom_call.1} parent=1 // pred_check_branch
      %33 = sbr.rel (0) target = $region13
    $region12: #{tpu_custom_call.1} parent=1 // pred_region
      %34 = dma.done [#allocation3], 128
    $region13: #{tpu_custom_call.1} parent=1 // pred_fallthru
      _
    // Predicated region
    $region14: #{tpu_custom_call.1} parent=1 // pred_check
      _
    $region15: #{tpu_custom_call.1} parent=1 // pred_check_branch
      %36 = sbr.rel (0) target = $region17
    $region16: #{tpu_custom_call.1} parent=1 // pred_region
      %37 = dma.done [#allocation6], 256
    $region17: #{tpu_custom_call.1} parent=1 // pred_fallthru
      _
    %v38 = vld [vmem:[#allocation2] sm:$0xff]
    %v39 = vld [vmem:[#allocation5] sm:$0xff]
    %v40 = vld [vmem:[#allocation5 + $0x8] sm:$0xff]
    %vm41 = vcmask 130048
    %v43 = vsel %vm41, %v38, 0
    %45 = vmatprep.subr.mxu0 0.0
    %46 = vmatpush1.msra.mxu0 %v39
    %47 = vmatprep.subr.mxu0 0.0
    %48 = vmatpush1.msra.mxu0 %v40
    %49 = vmatprep.subr.mxu0 0.0
    %50 = vmatpush1.msra.mxu0 0.0
    %51 = vmatprep.subr.mxu0 0.0
    %52 = vmatpush1.msra.mxu0 0.0
    %53 = vmatprep.subr.mxu0 0.0
    %54 = vmatpush1.msra.mxu0 0.0
    %55 = vmatprep.subr.mxu0 0.0
    %56 = vmatpush1.msra.mxu0 0.0
    %57 = vmatprep.subr.mxu0 0.0
    %58 = vmatpush1.msra.mxu0 0.0
    %59 = vmatprep.subr.mxu0 0.0
    %60 = vmatpush1.msra.mxu0 0.0
    %61 = vmatprep.subr.mxu0 0.0
    %62 = vmatpush1.msra.mxu0 0.0
    %63 = vmatprep.subr.mxu0 0.0
    %64 = vmatpush1.msra.mxu0 0.0
    %65 = vmatprep.subr.mxu0 0.0
    %66 = vmatpush1.msra.mxu0 0.0
    %67 = vmatprep.subr.mxu0 0.0
    %68 = vmatpush1.msra.mxu0 0.0
    %69 = vmatprep.subr.mxu0 0.0
    %70 = vmatpush1.msra.mxu0 0.0
    %71 = vmatprep.subr.mxu0 0.0
    %72 = vmatpush1.msra.mxu0 0.0
    %73 = vmatprep.subr.mxu0 0.0
    %74 = vmatpush1.msra.mxu0 0.0
    %75 = vmatprep.subr.mxu0 0.0
    %76 = vmatpush1.msra.mxu0 0.0
    %77 = vmatprep.subr.mxu0 0.0
    %78 = vmatpush1.msra.mxu0 0.0
    %79 = vmatprep.subr.mxu0 0.0
    %80 = vmatpush1.msra.mxu0 0.0
    %81 = vmatprep.subr.mxu0 0.0
    %82 = vmatpush1.msra.mxu0 0.0
    %83 = vmatprep.subr.mxu0 0.0
    %84 = vmatpush1.msra.mxu0 0.0
    %85 = vmatprep.subr.mxu0 0.0
    %86 = vmatpush1.msra.mxu0 0.0
    %87 = vmatprep.subr.mxu0 0.0
    %88 = vmatpush1.msra.mxu0 0.0
    %89 = vmatprep.subr.mxu0 0.0
    %90 = vmatpush1.msra.mxu0 0.0
    %91 = vmatprep.subr.mxu0 0.0
    %92 = vmatpush1.msra.mxu0 0.0
    %93 = vmatprep.subr.mxu0 0.0
    %94 = vmatpush1.msra.mxu0 0.0
    %95 = vmatprep.subr.mxu0 0.0
    %96 = vmatpush1.msra.mxu0 0.0
    %97 = vmatprep.subr.mxu0 0.0
    %98 = vmatpush1.msra.mxu0 0.0
    %99 = vmatprep.subr.mxu0 0.0
    %100 = vmatpush1.msra.mxu0 0.0
    %101 = vmatprep.subr.mxu0 0.0
    %102 = vmatpush1.msra.mxu0 0.0
    %103 = vmatprep.subr.mxu0 0.0
    %104 = vmatpush1.msra.mxu0 0.0
    %105 = vmatprep.subr.mxu0 0.0
    %106 = vmatpush1.msra.mxu0 0.0
    %107 = vmatprep.subr.mxu0 0.0
    %108 = vmatpush1.msra.mxu0 0.0
    %109 = vmatprep.mubr.f32.mxu0 0.0
    %110 = vmatmul.mubr.f32.gmra.mrb[0].mxu0 %v43
    %v111 = vpop.f32.mrb[0].mxu0
    %v112 = vadd.f32 0.0, %v111
    %v113 = vpop.f32.mrb[0].mxu0
    %114 = vdwg.mxu0
    %115 = vst [vmem:[#allocation7] sm:$0xff] %v112
    // Predicated region
    $region18: #{tpu_custom_call.1} parent=1 // pred_check
      _
    $region19: #{tpu_custom_call.1} parent=1 // pred_check_branch
      %117 = sbr.rel (0) target = $region21
    $region20: #{tpu_custom_call.1} parent=1 // pred_region
      %s119 = ssub.s32 128, 128
      %120 = vsyncadd [#allocation4], %s119
      %s122 = sshll.u32 [#allocation7], 4
      %s123 = int_to_ptr.vmem [resolvable:$true] %s122
      %125 = dma.vmem_to_hbm [thread:$0]  %s123, 128, %s2, [#allocation4]
    $region21: #{tpu_custom_call.1} parent=1 // pred_fallthru
      _
    // Predicated region
    $region22: #{tpu_custom_call.1} parent=1 // pred_check
      _
    $region23: #{tpu_custom_call.1} parent=1 // pred_check_branch
      %127 = sbr.rel (0) target = $region25
    $region24: #{tpu_custom_call.1} parent=1 // pred_region
      %128 = dma.done [#allocation4], 128
    $region25: #{tpu_custom_call.1} parent=1 // pred_fallthru
      _
    %129 = vsyncpa [#allocation3], 1
    %130 = vsyncpa [#allocation6], 1
    %131 = vsyncpa [#allocation4], 1

</llo_original>
